<compile_context>
chip_gen: v7x
topology: tpu7x:2x2x1
jax: 0.10.0
libtpu: 0.0.40
codegen_flags: <defaults>
</compile_context>

<pallas_src>
import functools
import math

import jax
import jax.numpy as jnp
from jax.experimental import pallas as pl
from jax.experimental.pallas import tpu as pltpu

_LANE = 128
_SUBLANE = 8
_NEG_LOG_1E8 = -math.log(1e-8)   # 18.4207...: makes the clamp(max=20) a no-op
_POS_PAD = 1e4                   # pad: d = 1e4 - 0 -> exp(-d) == 0 -> loss == 0
_NEG_PAD = 0.0


def _bpr_fused_kernel(pr_ref, nr_ref, pk_ref, nk_ref, out_rate_ref, out_link_ref,
                      *, nb_half, rate_geom, link_geom):
    """Accumulate (8,128) partial sums of the clamped BPR loss for both pairs."""
    c = pl.program_id(0)           # TensorCore split axis ("parallel")
    i = pl.program_id(1)           # streaming / reduction axis ("arbitrary")
    j = c * nb_half + i            # global block index

    @pl.when(i == 0)
    def _init():
        out_rate_ref[...] = jnp.zeros_like(out_rate_ref)
        out_link_ref[...] = jnp.zeros_like(out_link_ref)

    cap = jnp.float32(_NEG_LOG_1E8)

    def accumulate(pos_ref, neg_ref, acc_ref, geom):
        tb, rows = geom                 # Python ints (baked in)
        full_blocks = rows // tb        # blocks with no out-of-bounds rows
        rem_rows = rows % tb            # valid rows in the (optional) ragged block

        def loss_block():
            d = pos_ref[...].astype(jnp.float32) - neg_ref[...].astype(jnp.float32)
            # min(softplus(-d), -log(1e-8)) == clamp(-log(clamp(sigmoid(d),1e-8)), max=20)
            return jnp.minimum(jnp.log(1.0 + jnp.exp(-d)), cap)

        def fold(loss):                 # (tb,128) -> (8,128): pure VPU vreg adds
            if tb == _SUBLANE:
                return loss
            return loss.reshape(tb // _SUBLANE, _SUBLANE, _LANE).sum(axis=0)

        if full_blocks > 0:
            @pl.when(j < full_blocks)   # fast path: no mask arithmetic at all
            def _full():
                acc_ref[0] += fold(loss_block())

        if rem_rows > 0:                # statically-known ragged last block only
            @pl.when(j == full_blocks)
            def _ragged():
                row_id = jax.lax.broadcasted_iota(jnp.int32, (tb, _LANE), 0)
                # select (not multiply) so OOB garbage/NaN never reaches the sum
                masked = jnp.where(row_id < rem_rows, loss_block(), 0.0)
                acc_ref[0] += fold(masked)

    accumulate(pr_ref, nr_ref, out_rate_ref, rate_geom)
    accumulate(pk_ref, nk_ref, out_link_ref, link_geom)


def _prep_pair(pos, neg, block_rows):
    """Flatten, minimally pad to this pair's own lane multiple, view as (rows,128)."""
    def canon(x):
        x = jnp.asarray(x).reshape(-1)
        if x.dtype not in (jnp.float32, jnp.bfloat16):
            x = x.astype(jnp.float32)       # bf16 / f32 stream through untouched
        return x

    pos, neg = canon(pos), canon(neg)
    n = pos.shape[0]
    rows = max(1, -(-n // _LANE))
    if rows <= block_rows:
        rows = -(-rows // _SUBLANE) * _SUBLANE   # single full block, sublane aligned
        tb = rows
    else:
        tb = block_rows                          # multiple of 8 by construction

    padded = rows * _LANE

    def pad_tail(x, fill):
        extra = padded - x.shape[0]
        if extra:  # lane-aligned inputs reshape for free; otherwise append a small
                   # neutral-valued tail slab (padded slots contribute exactly 0)
            x = jnp.concatenate([x, jnp.full((extra,), fill, x.dtype)])
        return x.reshape(rows, _LANE)

    pos2 = pad_tail(pos, _POS_PAD)
    neg2 = pad_tail(neg, _NEG_PAD)
    nb = -(-rows // tb)
    return pos2, neg2, tb, rows, nb


def _bpr_fused_sums(pos_rate, neg_rate, pos_link, neg_link, *, block_rows=1024):
    """One fused streaming kernel producing both clamped -log(sigmoid) sums."""
    block_rows = max(_SUBLANE, (block_rows // _SUBLANE) * _SUBLANE)

    pr, nr, tb_r, rows_r, nb_r = _prep_pair(pos_rate, neg_rate, block_rows)
    pk, nk, tb_l, rows_l, nb_l = _prep_pair(pos_link, neg_link, block_rows)

    nb_total = max(nb_r, nb_l)
    n_cores = 2 if nb_total >= 2 else 1       # v7x: split streaming range over both TCs
    nb_half = -(-nb_total // n_cores)

    def in_map(nb_pair):
        # Clamp to this pair's own last block: once exhausted, Pallas sees a repeated
        # block index (no new DMA) and the kernel's pl.when gates skip its compute.
        return lambda c, i: (jnp.minimum(c * nb_half + i, nb_pair - 1), 0)

    out_spec = pl.BlockSpec((1, _SUBLANE, _LANE), lambda c, i: (c, 0, 0))
    out_sds = jax.ShapeDtypeStruct((n_cores, _SUBLANE, _LANE), jnp.float32)

    kernel = functools.partial(
        _bpr_fused_kernel, nb_half=nb_half,
        rate_geom=(tb_r, rows_r), link_geom=(tb_l, rows_l))

    out_rate, out_link = pl.pallas_call(
        kernel,
        out_shape=(out_sds, out_sds),
        grid_spec=pltpu.PrefetchScalarGridSpec(
            num_scalar_prefetch=0,
            grid=(n_cores, nb_half),
            in_specs=[pl.BlockSpec((tb_r, _LANE), in_map(nb_r)),
                      pl.BlockSpec((tb_r, _LANE), in_map(nb_r)),
                      pl.BlockSpec((tb_l, _LANE), in_map(nb_l)),
                      pl.BlockSpec((tb_l, _LANE), in_map(nb_l))],
            out_specs=(out_spec, out_spec),
        ),
        compiler_params=pltpu.CompilerParams(
            dimension_semantics=("parallel", "arbitrary"),
            vmem_limit_bytes=32 * 1024 * 1024),
    )(pr, nr, pk, nk)

    # Tiny epilogue: n_cores x 8 x 128 partials per term -> scalar.
    return jnp.sum(out_rate), jnp.sum(out_link)


class BPRLossPallas:
    """Mirror of the PyTorch BPRLoss module (config values baked in)."""

    def __init__(self, balance_factor=0.5, reduce_mode="mean"):
        self.balance_factor = balance_factor
        self.mode = reduce_mode

    def __call__(self, output):
        pos_rate_score, neg_rate_score, pos_link_score, neg_link_score = output
        rate_sum, link_sum = _bpr_fused_sums(
            pos_rate_score, neg_rate_score, pos_link_score, neg_link_score)
        if self.mode == "mean":
            rate_loss = rate_sum / jnp.float32(pos_rate_score.size)
            link_loss = link_sum / jnp.float32(pos_link_score.size)
        else:  # 'sum'
            rate_loss = rate_sum
            link_loss = link_sum
        return (rate_loss * jnp.float32(self.balance_factor), link_loss)


def _reference(output, balance_factor, mode):
    """Pure-JAX reference mirroring the PyTorch forward."""
    pos_r, neg_r, pos_l, neg_l = [jnp.asarray(x, jnp.float32) for x in output]
    red = jnp.mean if mode == "mean" else jnp.sum

    def term(p, n):
        s = jnp.maximum(jax.nn.sigmoid(p - n), 1e-8)   # clamp(min=1e-8)
        return red(jnp.minimum(-jnp.log(s), 20.0))     # clamp(max=20)

    return term(pos_r, neg_r) * balance_factor, term(pos_l, neg_l)


if __name__ == "__main__":
    key = jax.random.PRNGKey(0)
    k1, k2, k3, k4 = jax.random.split(key, 4)
    N_RATE = 256   # rate (pos, neg) pairs — lane-aligned path
    N_LINK = 200   # link (pos, neg) pairs — exercises neutral tail padding
    pos_rate = jax.random.normal(k1, (N_RATE,), jnp.float32)
    neg_rate = jax.random.normal(k2, (N_RATE,), jnp.float32)
    pos_link = jax.random.normal(k3, (N_LINK,), jnp.float32)
    neg_link = jax.random.normal(k4, (N_LINK,), jnp.float32)

    # config: balance_factor = 0.5, reduce_mode = 'mean'
    loss_fn = BPRLossPallas(balance_factor=0.5, reduce_mode="mean")
    rate_loss, link_loss = loss_fn((pos_rate, neg_rate, pos_link, neg_link))
    jax.block_until_ready((rate_loss, link_loss))

    ref_rate, ref_link = _reference(
        (pos_rate, neg_rate, pos_link, neg_link), 0.5, "mean")
    assert jnp.allclose(rate_loss, ref_rate, rtol=1e-5, atol=1e-5)
    assert jnp.allclose(link_loss, ref_link, rtol=1e-5, atol=1e-5)

    # Also exercise the multi-block / ragged-last-block / clamped-dedup /
    # two-core path by forcing tiny blocks (shapes stay small).
    k5, k6 = jax.random.split(k1)
    pr2 = jax.random.normal(k5, (2100,), jnp.float32)
    nr2 = jax.random.normal(k6, (2100,), jnp.float32)
    rs, ls = _bpr_fused_sums(pr2, nr2, pos_link, neg_link, block_rows=8)
    jax.block_until_ready((rs, ls))
    ref_rs, ref_ls = _reference((pr2, nr2, pos_link, neg_link), 1.0, "sum")
    assert jnp.allclose(rs, ref_rs, rtol=1e-4, atol=1e-3)
    assert jnp.allclose(ls, ref_ls, rtol=1e-4, atol=1e-3)

    print("KERNEL_OK")
</pallas_src>

<mosaic_0001>
module attributes {stable_mosaic.version = 11 : i64} {
  func.func @_bpr_fused_kernel(%arg0: i32, %arg1: i32, %arg2: memref<8x128xf32, #tpu.memory_space<vmem>>, %arg3: memref<8x128xf32, #tpu.memory_space<vmem>>, %arg4: memref<8x128xf32, #tpu.memory_space<vmem>>, %arg5: memref<8x128xf32, #tpu.memory_space<vmem>>, %arg6: memref<1x8x128xf32, #tpu.memory_space<vmem>>, %arg7: memref<1x8x128xf32, #tpu.memory_space<vmem>>) attributes {dimension_semantics = [#tpu.dimension_semantics<parallel>, #tpu.dimension_semantics<arbitrary>], iteration_bounds = array<i64: 1, 1>, scalar_prefetch = 0 : i64, scratch_operands = 0 : i64, tpu.core_type = #tpu.core_type<tc>, window_params = [{transform_indices = @transform_0, window_bounds = array<i64: 8, 128>}, {transform_indices = @transform_1, window_bounds = array<i64: 8, 128>}, {transform_indices = @transform_2, window_bounds = array<i64: 8, 128>}, {transform_indices = @transform_3, window_bounds = array<i64: 8, 128>}, {transform_indices = @transform_4, window_bounds = array<i64: 1, 8, 128>}, {transform_indices = @transform_5, window_bounds = array<i64: 1, 8, 128>}]} {
    %c1_i32 = arith.constant 1 : i32
    %0 = arith.muli %arg0, %c1_i32 : i32
    %1 = arith.addi %0, %arg1 : i32
    %c0_i32 = arith.constant 0 : i32
    %2 = arith.cmpi eq, %arg1, %c0_i32 : i32
    %3 = arith.extui %2 : i1 to i32
    %c0_i32_0 = arith.constant 0 : i32
    %4 = arith.cmpi ne, %3, %c0_i32_0 : i32
    scf.if %4 {
      %cst_6 = arith.constant 0.000000e+00 : f32
      %11 = vector.broadcast %cst_6 : f32 to vector<1x8x128xf32>
      %c0 = arith.constant 0 : index
      %c0_7 = arith.constant 0 : index
      %c0_8 = arith.constant 0 : index
      %12 = vector.load %arg6[%c0, %c0_7, %c0_8] : memref<1x8x128xf32, #tpu.memory_space<vmem>>, vector<1x8x128xf32>
      tpu.vector_store %arg6[%c0, %c0_7, %c0_8], %11 {strides = array<i32>} : memref<1x8x128xf32, #tpu.memory_space<vmem>>, vector<1x8x128xf32>,
      %cst_9 = arith.constant 0.000000e+00 : f32
      %13 = vector.broadcast %cst_9 : f32 to vector<1x8x128xf32>
      %c0_10 = arith.constant 0 : index
      %c0_11 = arith.constant 0 : index
      %c0_12 = arith.constant 0 : index
      %14 = vector.load %arg7[%c0_10, %c0_11, %c0_12] : memref<1x8x128xf32, #tpu.memory_space<vmem>>, vector<1x8x128xf32>
      tpu.vector_store %arg7[%c0_10, %c0_11, %c0_12], %13 {strides = array<i32>} : memref<1x8x128xf32, #tpu.memory_space<vmem>>, vector<1x8x128xf32>,
    } else {
    }
    %c1_i32_1 = arith.constant 1 : i32
    %5 = arith.cmpi slt, %1, %c1_i32_1 : i32
    %6 = arith.extui %5 : i1 to i32
    %cst = arith.constant 18.420681 : f32
    %c0_i32_2 = arith.constant 0 : i32
    %7 = arith.cmpi ne, %6, %c0_i32_2 : i32
    scf.if %7 {
      %c0 = arith.constant 0 : index
      %c0_6 = arith.constant 0 : index
      %c0_7 = arith.constant 0 : index
      %11 = vector.load %arg6[%c0, %c0_6, %c0_7] : memref<1x8x128xf32, #tpu.memory_space<vmem>>, vector<1x8x128xf32>
      %12 = vector.shape_cast %11 : vector<1x8x128xf32> to vector<8x128xf32>
      %c0_8 = arith.constant 0 : index
      %c0_9 = arith.constant 0 : index
      %13 = vector.load %arg2[%c0_8, %c0_9] : memref<8x128xf32, #tpu.memory_space<vmem>>, vector<8x128xf32>
      %c0_10 = arith.constant 0 : index
      %c0_11 = arith.constant 0 : index
      %14 = vector.load %arg3[%c0_10, %c0_11] : memref<8x128xf32, #tpu.memory_space<vmem>>, vector<8x128xf32>
      %15 = arith.subf %13, %14 : vector<8x128xf32>
      %cst_12 = arith.constant 0.000000e+00 : f32
      %16 = vector.broadcast %cst_12 : f32 to vector<8x128xf32>
      %17 = arith.subf %16, %15 : vector<8x128xf32>
      %18 = math.exp %17 : vector<8x128xf32>
      %cst_13 = arith.constant 1.000000e+00 : f32
      %19 = vector.broadcast %cst_13 : f32 to vector<8x128xf32>
      %20 = arith.addf %19, %18 : vector<8x128xf32>
      %21 = math.log %20 : vector<8x128xf32>
      %22 = vector.broadcast %cst : f32 to vector<8x128xf32>
      %23 = arith.minimumf %21, %22 : vector<8x128xf32>
      %24 = arith.addf %12, %23 : vector<8x128xf32>
      %c0_14 = arith.constant 0 : index
      %c0_15 = arith.constant 0 : index
      %c0_16 = arith.constant 0 : index
      %25 = vector.load %arg6[%c0_14, %c0_15, %c0_16] : memref<1x8x128xf32, #tpu.memory_space<vmem>>, vector<1x8x128xf32>
      %26 = vector.shape_cast %25 : vector<1x8x128xf32> to vector<8x128xf32>
      %27 = vector.shape_cast %24 : vector<8x128xf32> to vector<1x8x128xf32>
      tpu.vector_store %arg6[%c0_14, %c0_15, %c0_16], %27 {strides = array<i32>} : memref<1x8x128xf32, #tpu.memory_space<vmem>>, vector<1x8x128xf32>,
    } else {
    }
    %c1_i32_3 = arith.constant 1 : i32
    %8 = arith.cmpi slt, %1, %c1_i32_3 : i32
    %9 = arith.extui %8 : i1 to i32
    %cst_4 = arith.constant 18.420681 : f32
    %c0_i32_5 = arith.constant 0 : i32
    %10 = arith.cmpi ne, %9, %c0_i32_5 : i32
    scf.if %10 {
      %c0 = arith.constant 0 : index
      %c0_6 = arith.constant 0 : index
      %c0_7 = arith.constant 0 : index
      %11 = vector.load %arg7[%c0, %c0_6, %c0_7] : memref<1x8x128xf32, #tpu.memory_space<vmem>>, vector<1x8x128xf32>
      %12 = vector.shape_cast %11 : vector<1x8x128xf32> to vector<8x128xf32>
      %c0_8 = arith.constant 0 : index
      %c0_9 = arith.constant 0 : index
      %13 = vector.load %arg4[%c0_8, %c0_9] : memref<8x128xf32, #tpu.memory_space<vmem>>, vector<8x128xf32>
      %c0_10 = arith.constant 0 : index
      %c0_11 = arith.constant 0 : index
      %14 = vector.load %arg5[%c0_10, %c0_11] : memref<8x128xf32, #tpu.memory_space<vmem>>, vector<8x128xf32>
      %15 = arith.subf %13, %14 : vector<8x128xf32>
      %cst_12 = arith.constant 0.000000e+00 : f32
      %16 = vector.broadcast %cst_12 : f32 to vector<8x128xf32>
      %17 = arith.subf %16, %15 : vector<8x128xf32>
      %18 = math.exp %17 : vector<8x128xf32>
      %cst_13 = arith.constant 1.000000e+00 : f32
      %19 = vector.broadcast %cst_13 : f32 to vector<8x128xf32>
      %20 = arith.addf %19, %18 : vector<8x128xf32>
      %21 = math.log %20 : vector<8x128xf32>
      %22 = vector.broadcast %cst_4 : f32 to vector<8x128xf32>
      %23 = arith.minimumf %21, %22 : vector<8x128xf32>
      %24 = arith.addf %12, %23 : vector<8x128xf32>
      %c0_14 = arith.constant 0 : index
      %c0_15 = arith.constant 0 : index
      %c0_16 = arith.constant 0 : index
      %25 = vector.load %arg7[%c0_14, %c0_15, %c0_16] : memref<1x8x128xf32, #tpu.memory_space<vmem>>, vector<1x8x128xf32>
      %26 = vector.shape_cast %25 : vector<1x8x128xf32> to vector<8x128xf32>
      %27 = vector.shape_cast %24 : vector<8x128xf32> to vector<1x8x128xf32>
      tpu.vector_store %arg7[%c0_14, %c0_15, %c0_16], %27 {strides = array<i32>} : memref<1x8x128xf32, #tpu.memory_space<vmem>>, vector<1x8x128xf32>,
    } else {
    }
    return
  }
  func.func @transform_0(%arg0: i32, %arg1: i32) -> (i32, i32) {
    %c1_i32 = arith.constant 1 : i32
    %0 = arith.muli %arg0, %c1_i32 : i32
    %1 = arith.addi %0, %arg1 : i32
    %c0_i32 = arith.constant 0 : i32
    %2 = arith.minsi %1, %c0_i32 : i32
    %c0_i32_0 = arith.constant 0 : i32
    %c0_i32_1 = arith.constant 0 : i32
    return %2, %c0_i32_0 : i32, i32
  }
  func.func @transform_1(%arg0: i32, %arg1: i32) -> (i32, i32) {
    %c1_i32 = arith.constant 1 : i32
    %0 = arith.muli %arg0, %c1_i32 : i32
    %1 = arith.addi %0, %arg1 : i32
    %c0_i32 = arith.constant 0 : i32
    %2 = arith.minsi %1, %c0_i32 : i32
    %c0_i32_0 = arith.constant 0 : i32
    %c0_i32_1 = arith.constant 0 : i32
    return %2, %c0_i32_0 : i32, i32
  }
  func.func @transform_2(%arg0: i32, %arg1: i32) -> (i32, i32) {
    %c1_i32 = arith.constant 1 : i32
    %0 = arith.muli %arg0, %c1_i32 : i32
    %1 = arith.addi %0, %arg1 : i32
    %c0_i32 = arith.constant 0 : i32
    %2 = arith.minsi %1, %c0_i32 : i32
    %c0_i32_0 = arith.constant 0 : i32
    %c0_i32_1 = arith.constant 0 : i32
    return %2, %c0_i32_0 : i32, i32
  }
  func.func @transform_3(%arg0: i32, %arg1: i32) -> (i32, i32) {
    %c1_i32 = arith.constant 1 : i32
    %0 = arith.muli %arg0, %c1_i32 : i32
    %1 = arith.addi %0, %arg1 : i32
    %c0_i32 = arith.constant 0 : i32
    %2 = arith.minsi %1, %c0_i32 : i32
    %c0_i32_0 = arith.constant 0 : i32
    %c0_i32_1 = arith.constant 0 : i32
    return %2, %c0_i32_0 : i32, i32
  }
  func.func @transform_4(%arg0: i32, %arg1: i32) -> (i32, i32, i32) {
    %c0_i32 = arith.constant 0 : i32
    %c0_i32_0 = arith.constant 0 : i32
    %c0_i32_1 = arith.constant 0 : i32
    return %arg0, %c0_i32, %c0_i32_0 : i32, i32, i32
  }
  func.func @transform_5(%arg0: i32, %arg1: i32) -> (i32, i32, i32) {
    %c0_i32 = arith.constant 0 : i32
    %c0_i32_0 = arith.constant 0 : i32
    %c0_i32_1 = arith.constant 0 : i32
    return %arg0, %c0_i32, %c0_i32_0 : i32, i32, i32
  }
}

</mosaic_0001>

<llo_original>
// kernel: tpu_custom_call.1
$region0: #{tpu_custom_call.1}
  #allocation0 [shape = 'u32[]', space=smem, size = 0x4, offset = 0x4, fixed_abs, tag = 'smem constant byte address 0x4 - core index']
  #allocation1 [shape = 'u32[144,128]{1,0:T(1,128)}', space=vmem, size = 0x12000, scoped, tag = 'internal scratch']
  %s0 = inlined_call_operand.hbm [shape: f32[8,128], index: 0, kind: input, shape index: {}]
  %s1 = inlined_call_operand.hbm [shape: f32[8,128], index: 1, kind: input, shape index: {}]
  %s2 = inlined_call_operand.hbm [shape: f32[8,128], index: 2, kind: input, shape index: {}]
  %s3 = inlined_call_operand.vmem [shape: f32[8,128], index: 3, kind: input, shape index: {}]
  %s4 = inlined_call_operand.hbm [shape: f32[1,8,128], index: 4, kind: output, shape index: {0}]
  %s5 = inlined_call_operand.hbm [shape: f32[1,8,128], index: 5, kind: output, shape index: {1}]
  %6 = xla_tuple %s4, %s5
  %s7 = sld [smem:[#allocation0]]
  $region54: #{tpu_custom_call.1} parent=0
    _
  %s9 = ssub.s32 1, %s7
  %s10 = scalar_select 0, %s9, %s7
  $region1: #{tpu_custom_call.1} parent=0
    #allocation2 [shape = 'u8[4096]{0}', space=vmem, size = 0x1000, scoped, tag = 'input window, operand 0, single buffered']
    #allocation3 [shape = 's32[1]{0}', space=sflag, size = 0x4, scoped, tag = 'scoped memory for tpu_custom_call.1']
    #allocation4 [shape = 's32[1]{0}', space=sflag, size = 0x4, scoped, tag = 'scoped memory for tpu_custom_call.1']
    #allocation5 [shape = 'u8[4096]{0}', space=vmem, size = 0x1000, scoped, tag = 'input window, operand 1, single buffered']
    #allocation6 [shape = 's32[1]{0}', space=sflag, size = 0x4, scoped, tag = 'scoped memory for tpu_custom_call.1']
    #allocation7 [shape = 'u8[4096]{0}', space=vmem, size = 0x1000, scoped, tag = 'input window, operand 2, single buffered']
    #allocation8 [shape = 'u8[4096]{0}', space=vmem, size = 0x1000, scoped, tag = 'output window, operand 0, single buffered']
    #allocation9 [shape = 'u8[4096]{0}', space=vmem, size = 0x1000, scoped, tag = 'output window, operand 1, single buffered']
    #allocation10 [shape = 's32[1]{0}', space=sflag, size = 0x4, scoped, tag = 'scoped memory for tpu_custom_call.1']
    %11 = vsyncpa [#allocation3], 0
    %12 = vsyncpa [#allocation6], 0
    %13 = vsyncpa [#allocation4], 0
    %14 = vsyncpa [#allocation10], 0
    // Predicated region
    $region2: #{tpu_custom_call.1} parent=1 // pred_check
      _
    $region3: #{tpu_custom_call.1} parent=1 // pred_check_branch
      %16 = sbr.rel (0) target = $region5
    $region4: #{tpu_custom_call.1} parent=1 // pred_region
      %s17 = sadd.s32 0, 0
      %p18 = scmp.lt.s32.totalorder %s17, 0
      %s19 = scalar_select %p18, %s17, 0
      %s21 = ssub.s32 128, 128
      %22 = vsyncadd [#allocation3], %s21
      %s23 = smul.addr %s19, 128
      %s24 = scalar_lea.hbm %s0, %s23
      %s26 = sshll.u32 [#allocation2], 4
      %s27 = int_to_ptr.vmem [resolvable:$true] %s26
      %29 = dma.hbm_to_vmem [thread:$0]  %s24, 128, %s27, [#allocation3]
    $region5: #{tpu_custom_call.1} parent=1 // pred_fallthru
      _
    // Predicated region
    $region6: #{tpu_custom_call.1} parent=1 // pred_check
      _
    $region7: #{tpu_custom_call.1} parent=1 // pred_check_branch
      %31 = sbr.rel (0) target = $region9
    $region8: #{tpu_custom_call.1} parent=1 // pred_region
      %s32 = sadd.s32 0, 0
      %p33 = scmp.lt.s32.totalorder %s32, 0
      %s34 = scalar_select %p33, %s32, 0
      %s36 = ssub.s32 128, 128
      %37 = vsyncadd [#allocation6], %s36
      %s38 = smul.addr %s34, 128
      %s39 = scalar_lea.hbm %s1, %s38
      %s41 = sshll.u32 [#allocation5], 4
      %s42 = int_to_ptr.vmem [resolvable:$true] %s41
      %44 = dma.hbm_to_vmem [thread:$0]  %s39, 128, %s42, [#allocation6]
    $region9: #{tpu_custom_call.1} parent=1 // pred_fallthru
      _
    // Predicated region
    $region10: #{tpu_custom_call.1} parent=1 // pred_check
      _
    $region11: #{tpu_custom_call.1} parent=1 // pred_check_branch
      %46 = sbr.rel (0) target = $region13
    $region12: #{tpu_custom_call.1} parent=1 // pred_region
      %s47 = sadd.s32 0, 0
      %p48 = scmp.lt.s32.totalorder %s47, 0
      %s49 = scalar_select %p48, %s47, 0
      %s51 = ssub.s32 128, 128
      %52 = vsyncadd [#allocation6], %s51
      %s53 = smul.addr %s49, 128
      %s54 = scalar_lea.hbm %s2, %s53
      %s56 = sshll.u32 [#allocation7], 4
      %s57 = int_to_ptr.vmem [resolvable:$true] %s56
      %59 = dma.hbm_to_vmem [thread:$0]  %s54, 128, %s57, [#allocation6]
    $region13: #{tpu_custom_call.1} parent=1 // pred_fallthru
      _
    // Predicated region
    $region14: #{tpu_custom_call.1} parent=1 // pred_check
      _
    $region15: #{tpu_custom_call.1} parent=1 // pred_check_branch
      %61 = sbr.rel (0) target = $region17
    $region16: #{tpu_custom_call.1} parent=1 // pred_region
      %s62 = sadd.s32 0, 0
      %p63 = scmp.lt.s32.totalorder %s62, 0
      %s64 = scalar_select %p63, %s62, 0
      %p65 = scmp.lt.s32.totalorder %s64, 0
      %s66 = scalar_select %p65, %s64, 0
      %s67 = smul.addr %s66, 8
      %s68 = scalar_lea.vmem %s3, %s67
      %s69 = sadd.s32 0, 0
      %p70 = scmp.lt.s32.totalorder %s69, 0
      %s71 = scalar_select %p70, %s69, 0
    $region17: #{tpu_custom_call.1} parent=1 // pred_fallthru
      _
    // Predicated region
    $region18: #{tpu_custom_call.1} parent=1 // pred_check
      _
    $region19: #{tpu_custom_call.1} parent=1 // pred_check_branch
      %73 = sbr.rel (0) target = $region21
    $region20: #{tpu_custom_call.1} parent=1 // pred_region
      %74 = dma.done [#allocation3], 128
    $region21: #{tpu_custom_call.1} parent=1 // pred_fallthru
      _
    // Predicated region
    $region22: #{tpu_custom_call.1} parent=1 // pred_check
      _
    $region23: #{tpu_custom_call.1} parent=1 // pred_check_branch
      %76 = sbr.rel (0) target = $region25
    $region24: #{tpu_custom_call.1} parent=1 // pred_region
      %77 = dma.done [#allocation6], 128
    $region25: #{tpu_custom_call.1} parent=1 // pred_fallthru
      _
    // Predicated region
    $region26: #{tpu_custom_call.1} parent=1 // pred_check
      _
    $region27: #{tpu_custom_call.1} parent=1 // pred_check_branch
      %79 = sbr.rel (0) target = $region29
    $region28: #{tpu_custom_call.1} parent=1 // pred_region
      %80 = dma.done [#allocation6], 128
    $region29: #{tpu_custom_call.1} parent=1 // pred_fallthru
      _
    %s81 = sadd.s32 0, 0
    %p82 = scmp.lt.s32.totalorder %s81, 0
    %s83 = scalar_select %p82, %s81, 0
    %p84 = scmp.lt.s32.totalorder %s83, 0
    %s85 = scalar_select %p84, %s83, 0
    %s86 = smul.addr %s85, 8
    %s87 = scalar_lea.vmem %s3, %s86
    %s88 = sadd.s32 0, 0
    %p89 = scmp.lt.s32.totalorder %s88, 0
    %s90 = scalar_select %p89, %s88, 0
    %s91 = sadd.s32 0, 0
    %p92 = scmp.lt.s32.totalorder %s91, 0
    %s93 = scalar_select %p92, %s91, 0
    %s94 = sadd.s32 0, 0
    %p95 = scmp.lt.s32.totalorder %s94, 0
    %s96 = scalar_select %p95, %s94, 0
    %s97 = sadd.s32 0, 0
    %p98 = scmp.lt.s32.totalorder %s97, 0
    %s99 = scalar_select %p98, %s97, 0
    %p100 = scmp.lt.s32.totalorder %s99, 0
    %s101 = scalar_select %p100, %s99, 0
    %s102 = smul.addr %s101, 8
    %s103 = scalar_lea.vmem %s3, %s102
    %s104 = sadd.s32 0, 0
    %p105 = scmp.lt.s32.totalorder %s104, 0
    %s106 = scalar_select %p105, %s104, 0
    %s107 = sadd.s32 0, 0
    %p108 = scmp.eq.s32.totalorder 0, 0
    // Predicated region
    $region30: #{tpu_custom_call.1} parent=1 // pred_check
      %p109 = pneg %p108
    $region31: #{tpu_custom_call.1} parent=1 // pred_check_branch
      %111 = sbr.rel (%p109) target = $region33
    $region32: #{tpu_custom_call.1} parent=1 // pred_region
      %112 = vst [vmem:[#allocation8] sm:$0xff] 0.0
      %113 = vst [vmem:[#allocation9] sm:$0xff] 0.0
    $region33: #{tpu_custom_call.1} parent=1 // pred_fallthru
      _
    %p114 = scmp.lt.s32.totalorder %s107, 1
    // Predicated region
    $region34: #{tpu_custom_call.1} parent=1 // pred_check
      %p115 = pneg %p114
    $region35: #{tpu_custom_call.1} parent=1 // pred_check_branch
      %117 = sbr.rel (%p115) target = $region37
    $region36: #{tpu_custom_call.1} parent=1 // pred_region
      %v118 = vld [vmem:[#allocation8] sm:$0xff]
      %v119 = vld [vmem:[#allocation2] sm:$0xff]
      %v120 = vld [vmem:[#allocation5] sm:$0xff]
      %v121 = vsub.f32 %v119, %v120
      %v122 = vsub.f32 0.0, %v121
      %v123 = vmul.f32 %v122, 1.442695
      %v124 = vpow.pop %v123
      %v125 = vadd.f32 %v124, 1.0
      %v126 = vlog2.pop %v125
      %v127 = vmul.f32 %v126, 0.6931472
      %v128 = vmin.f32 %v127, 18.420681
      %v129 = vadd.f32 %v118, %v128
      %130 = vst [vmem:[#allocation8] sm:$0xff] %v129
      %v131 = vld [vmem:[#allocation9] sm:$0xff]
      %v132 = vld [vmem:[#allocation7] sm:$0xff]
      %v133 = vld [vmem:[%s103] sm:$0xff]
      %v134 = vsub.f32 %v132, %v133
      %v135 = vsub.f32 0.0, %v134
      %v136 = vmul.f32 %v135, 1.442695
      %v137 = vpow.pop %v136
      %v138 = vadd.f32 %v137, 1.0
      %v139 = vlog2.pop %v138
      %v140 = vmul.f32 %v139, 0.6931472
      %v141 = vmin.f32 %v140, 18.420681
      %v142 = vadd.f32 %v131, %v141
      %143 = vst [vmem:[#allocation9] sm:$0xff] %v142
    $region37: #{tpu_custom_call.1} parent=1 // pred_fallthru
      _
    // Predicated region
    $region38: #{tpu_custom_call.1} parent=1 // pred_check
      _
    $region39: #{tpu_custom_call.1} parent=1 // pred_check_branch
      %145 = sbr.rel (0) target = $region41
    $region40: #{tpu_custom_call.1} parent=1 // pred_region
      %s147 = ssub.s32 128, 128
      %148 = vsyncadd [#allocation4], %s147
      %s150 = sshll.u32 [#allocation8], 4
      %s151 = int_to_ptr.vmem [resolvable:$true] %s150
      %153 = dma.vmem_to_hbm [thread:$0]  %s151, 128, %s4, [#allocation4]
    $region41: #{tpu_custom_call.1} parent=1 // pred_fallthru
      _
    // Predicated region
    $region42: #{tpu_custom_call.1} parent=1 // pred_check
      _
    $region43: #{tpu_custom_call.1} parent=1 // pred_check_branch
      %155 = sbr.rel (0) target = $region45
    $region44: #{tpu_custom_call.1} parent=1 // pred_region
      %s157 = ssub.s32 128, 128
      %158 = vsyncadd [#allocation10], %s157
      %s160 = sshll.u32 [#allocation9], 4
      %s161 = int_to_ptr.vmem [resolvable:$true] %s160
      %163 = dma.vmem_to_hbm [thread:$0]  %s161, 128, %s5, [#allocation10]
    $region45: #{tpu_custom_call.1} parent=1 // pred_fallthru
      _
    // Predicated region
    $region46: #{tpu_custom_call.1} parent=1 // pred_check
      _
    $region47: #{tpu_custom_call.1} parent=1 // pred_check_branch
      %165 = sbr.rel (0) target = $region49
    $region48: #{tpu_custom_call.1} parent=1 // pred_region
      %166 = dma.done [#allocation4], 128
    $region49: #{tpu_custom_call.1} parent=1 // pred_fallthru
      _
    // Predicated region
    $region50: #{tpu_custom_call.1} parent=1 // pred_check
      _
    $region51: #{tpu_custom_call.1} parent=1 // pred_check_branch
      %168 = sbr.rel (0) target = $region53
    $region52: #{tpu_custom_call.1} parent=1 // pred_region
      %169 = dma.done [#allocation10], 128
    $region53: #{tpu_custom_call.1} parent=1 // pred_fallthru
      _
    %170 = vsyncpa [#allocation3], 1
    %171 = vsyncpa [#allocation6], 1
    %172 = vsyncpa [#allocation4], 1
    %173 = vsyncpa [#allocation10], 1

</llo_original>
